<compile_context>
chip_gen: v6e
topology: v6e:2x2x1
jax: 0.10.0
libtpu: 0.0.40
codegen_flags: <defaults>
</compile_context>

<pallas_src>
import jax
import jax.numpy as jnp
from jax.experimental import pallas as pl
from jax.experimental.pallas import tpu as pltpu


def make_xor_kernel(input_dim: int, hidden_dim: int, output_dim: int):
    """Build a kernel specialized for the (tiny, static) layer sizes.

    Parameter packing layout (flat f32, PyTorch row-major):
      [ w1 (hidden*input) | b1 (hidden) | w2 (output*hidden) | b2 (output) ]
    """
    w1_off = 0
    b1_off = w1_off + hidden_dim * input_dim
    w2_off = b1_off + hidden_dim
    b2_off = w2_off + output_dim * hidden_dim

    def kernel(x_ref, p_ref, o_ref):
        x = x_ref[...]  # (B, input_dim) f32 in VMEM

        # fc1 + ReLU: each hidden unit is an unrolled chain of VPU MADs with
        # scalar weights read from SMEM (static offsets -> plain sld).
        hidden_cols = []
        for h in range(hidden_dim):
            acc = x[:, 0:1] * p_ref[w1_off + h * input_dim + 0]
            for i in range(1, input_dim):
                acc = acc + x[:, i : i + 1] * p_ref[w1_off + h * input_dim + i]
            acc = acc + p_ref[b1_off + h]
            hidden_cols.append(jnp.maximum(acc, 0.0))  # ReLU

        # fc2: same VPU MAD pattern over the hidden columns.
        out_cols = []
        for o in range(output_dim):
            acc = hidden_cols[0] * p_ref[w2_off + o * hidden_dim + 0]
            for h in range(1, hidden_dim):
                acc = acc + hidden_cols[h] * p_ref[w2_off + o * hidden_dim + h]
            out_cols.append(acc + p_ref[b2_off + o])

        y = out_cols[0] if output_dim == 1 else jnp.concatenate(out_cols, axis=1)
        o_ref[...] = y.astype(o_ref.dtype)

    return kernel


def xor_forward(x, w1, b1, w2, b2):
    """x: (B, input_dim); w1: (hidden, input_dim); b1: (hidden,);
       w2: (out, hidden); b2: (out,)  -- PyTorch nn.Linear parameter layout."""
    B, input_dim = x.shape
    hidden_dim = w1.shape[0]
    output_dim = w2.shape[0]

    # Single packed parameter vector (no transposes; PyTorch row-major flat).
    params = jnp.concatenate(
        [
            jnp.asarray(w1, jnp.float32).reshape(-1),
            jnp.asarray(b1, jnp.float32).reshape(-1),
            jnp.asarray(w2, jnp.float32).reshape(-1),
            jnp.asarray(b2, jnp.float32).reshape(-1),
        ]
    )

    kernel = make_xor_kernel(input_dim, hidden_dim, output_dim)

    return pl.pallas_call(
        kernel,
        out_shape=jax.ShapeDtypeStruct((B, output_dim), jnp.float32),
        in_specs=[
            pl.BlockSpec(memory_space=pltpu.MemorySpace.VMEM),   # x (whole array)
            pl.BlockSpec(memory_space=pltpu.MemorySpace.SMEM),   # packed params
        ],
        out_specs=pl.BlockSpec(memory_space=pltpu.MemorySpace.VMEM),
    )(jnp.asarray(x, jnp.float32), params)
    # TODO(synk): if batch ever scales up, tile B with a "parallel" grid axis and
    # present a lane-dense output slab; irrelevant at B=8.


if __name__ == "__main__":
    key = jax.random.PRNGKey(0)
    k_x, k_w1, k_b1, k_w2, k_b2 = jax.random.split(key, 5)

    input_dim, hidden_dim, output_dim = 2, 2, 1
    B = 8

    # Deterministic parameter init (PyTorch Linear-style uniform bounds).
    bound1 = 1.0 / (input_dim ** 0.5)
    bound2 = 1.0 / (hidden_dim ** 0.5)
    w1 = jax.random.uniform(k_w1, (hidden_dim, input_dim), jnp.float32, -bound1, bound1)
    b1 = jax.random.uniform(k_b1, (hidden_dim,), jnp.float32, -bound1, bound1)
    w2 = jax.random.uniform(k_w2, (output_dim, hidden_dim), jnp.float32, -bound2, bound2)
    b2 = jax.random.uniform(k_b2, (output_dim,), jnp.float32, -bound2, bound2)

    x = jax.random.uniform(k_x, (B, input_dim), jnp.float32)

    out = xor_forward(x, w1, b1, w2, b2)
    jax.block_until_ready(out)

    # Pure-JAX reference check (same PyTorch nn.Linear semantics).
    ref = jnp.maximum(x @ w1.T + b1, 0.0) @ w2.T + b2
    assert out.shape == (B, output_dim), out.shape
    assert jnp.allclose(out, ref, atol=1e-5), (out, ref)

    print("KERNEL_OK")
</pallas_src>

<mosaic_0001>
module attributes {stable_mosaic.version = 11 : i64} {
  func.func @kernel(%arg0: memref<8x2xf32, #tpu.memory_space<vmem>>, %arg1: memref<9xf32, #tpu.memory_space<smem>>, %arg2: memref<8x1xf32, #tpu.memory_space<vmem>>) attributes {dimension_semantics = [], scalar_prefetch = 0 : i64, scratch_operands = 0 : i64, tpu.core_type = #tpu.core_type<tc>} {
    %c0 = arith.constant 0 : index
    %c0_0 = arith.constant 0 : index
    %0 = vector.load %arg0[%c0, %c0_0] : memref<8x2xf32, #tpu.memory_space<vmem>>, vector<8x2xf32>
    %1 = vector.extract_strided_slice %0 {offsets = [0, 0], sizes = [8, 1], strides = [1, 1]} : vector<8x2xf32> to vector<8x1xf32>
    %c0_1 = arith.constant 0 : index
    %2 = memref.load %arg1[%c0_1] : memref<9xf32, #tpu.memory_space<smem>>
    %3 = vector.broadcast %2 : f32 to vector<8x1xf32>
    %4 = arith.mulf %1, %3 : vector<8x1xf32>
    %5 = vector.extract_strided_slice %0 {offsets = [0, 1], sizes = [8, 1], strides = [1, 1]} : vector<8x2xf32> to vector<8x1xf32>
    %c1 = arith.constant 1 : index
    %6 = memref.load %arg1[%c1] : memref<9xf32, #tpu.memory_space<smem>>
    %7 = vector.broadcast %6 : f32 to vector<8x1xf32>
    %8 = arith.mulf %5, %7 : vector<8x1xf32>
    %9 = arith.addf %4, %8 : vector<8x1xf32>
    %c4 = arith.constant 4 : index
    %10 = memref.load %arg1[%c4] : memref<9xf32, #tpu.memory_space<smem>>
    %11 = vector.broadcast %10 : f32 to vector<8x1xf32>
    %12 = arith.addf %9, %11 : vector<8x1xf32>
    %cst = arith.constant 0.000000e+00 : f32
    %13 = vector.broadcast %cst : f32 to vector<8x1xf32>
    %14 = arith.maximumf %12, %13 : vector<8x1xf32>
    %15 = vector.extract_strided_slice %0 {offsets = [0, 0], sizes = [8, 1], strides = [1, 1]} : vector<8x2xf32> to vector<8x1xf32>
    %c2 = arith.constant 2 : index
    %16 = memref.load %arg1[%c2] : memref<9xf32, #tpu.memory_space<smem>>
    %17 = vector.broadcast %16 : f32 to vector<8x1xf32>
    %18 = arith.mulf %15, %17 : vector<8x1xf32>
    %19 = vector.extract_strided_slice %0 {offsets = [0, 1], sizes = [8, 1], strides = [1, 1]} : vector<8x2xf32> to vector<8x1xf32>
    %c3 = arith.constant 3 : index
    %20 = memref.load %arg1[%c3] : memref<9xf32, #tpu.memory_space<smem>>
    %21 = vector.broadcast %20 : f32 to vector<8x1xf32>
    %22 = arith.mulf %19, %21 : vector<8x1xf32>
    %23 = arith.addf %18, %22 : vector<8x1xf32>
    %c5 = arith.constant 5 : index
    %24 = memref.load %arg1[%c5] : memref<9xf32, #tpu.memory_space<smem>>
    %25 = vector.broadcast %24 : f32 to vector<8x1xf32>
    %26 = arith.addf %23, %25 : vector<8x1xf32>
    %cst_2 = arith.constant 0.000000e+00 : f32
    %27 = vector.broadcast %cst_2 : f32 to vector<8x1xf32>
    %28 = arith.maximumf %26, %27 : vector<8x1xf32>
    %c6 = arith.constant 6 : index
    %29 = memref.load %arg1[%c6] : memref<9xf32, #tpu.memory_space<smem>>
    %30 = vector.broadcast %29 : f32 to vector<8x1xf32>
    %31 = arith.mulf %14, %30 : vector<8x1xf32>
    %c7 = arith.constant 7 : index
    %32 = memref.load %arg1[%c7] : memref<9xf32, #tpu.memory_space<smem>>
    %33 = vector.broadcast %32 : f32 to vector<8x1xf32>
    %34 = arith.mulf %28, %33 : vector<8x1xf32>
    %35 = arith.addf %31, %34 : vector<8x1xf32>
    %c8 = arith.constant 8 : index
    %36 = memref.load %arg1[%c8] : memref<9xf32, #tpu.memory_space<smem>>
    %37 = vector.broadcast %36 : f32 to vector<8x1xf32>
    %38 = arith.addf %35, %37 : vector<8x1xf32>
    %c0_3 = arith.constant 0 : index
    %c0_4 = arith.constant 0 : index
    %39 = vector.load %arg2[%c0_3, %c0_4] : memref<8x1xf32, #tpu.memory_space<vmem>>, vector<8x1xf32>
    tpu.vector_store %arg2[%c0_3, %c0_4], %38 {strides = array<i32>} : memref<8x1xf32, #tpu.memory_space<vmem>>, vector<8x1xf32>,
    return
  }
}

</mosaic_0001>

<llo_original>
// kernel: tpu_custom_call.1
$region0: #{tpu_custom_call.1}
  #allocation0 [shape = 'u32[]', space=smem, size = 0x4, offset = 0x4, fixed_abs, tag = 'smem constant byte address 0x4 - core index']
  #allocation1 [shape = 'u32[144,128]{1,0:T(1,128)}', space=vmem, size = 0x12000, scoped, tag = 'internal scratch']
  %s0 = inlined_call_operand.vmem [shape: f32[8,2], index: 0, kind: input, shape index: {}]
  %s1 = inlined_call_operand.vmem [shape: f32[9], index: 1, kind: input, shape index: {}]
  %s2 = inlined_call_operand.vmem [shape: f32[8,1], index: 2, kind: output, shape index: {}]
  %s3 = sld [smem:[#allocation0]]
  $region22: #{tpu_custom_call.1} parent=0
    _
  %s5 = ssub.s32 1, %s3
  %s6 = scalar_select 0, %s5, %s3
  $region1: #{tpu_custom_call.1} parent=0
    #allocation2 [shape = 'u8[512]{0}', space=smem, size = 0x200, scoped, tag = 'input window, operand 1, single buffered']
    #allocation3 [shape = 's32[1]{0}', space=sflag, size = 0x4, scoped, tag = 'scoped memory for tpu_custom_call.1']
    %7 = vsyncpa [#allocation3], 0
    // Predicated region
    $region2: #{tpu_custom_call.1} parent=1 // pred_check
      _
    $region3: #{tpu_custom_call.1} parent=1 // pred_check_branch
      %9 = sbr.rel (0) target = $region5
    $region4: #{tpu_custom_call.1} parent=1 // pred_region
      _
    $region5: #{tpu_custom_call.1} parent=1 // pred_fallthru
      _
    // Predicated region
    $region6: #{tpu_custom_call.1} parent=1 // pred_check
      _
    $region7: #{tpu_custom_call.1} parent=1 // pred_check_branch
      %11 = sbr.rel (0) target = $region9
    $region8: #{tpu_custom_call.1} parent=1 // pred_region
      %s13 = ssub.s32 16, 16
      %14 = vsyncadd [#allocation3], %s13
      %s16 = sshll.u32 %s1, 4
      %s17 = int_to_ptr.vmem [resolvable:$true] %s16
      %19 = dma.vmem_to_smem %s17, 16, [#allocation2], [#allocation3]
    $region9: #{tpu_custom_call.1} parent=1 // pred_fallthru
      _
    // Predicated region
    $region10: #{tpu_custom_call.1} parent=1 // pred_check
      _
    $region11: #{tpu_custom_call.1} parent=1 // pred_check_branch
      %21 = sbr.rel (0) target = $region13
    $region12: #{tpu_custom_call.1} parent=1 // pred_region
      %22 = dma.done [#allocation3], 16
    $region13: #{tpu_custom_call.1} parent=1 // pred_fallthru
      _
    %23 = sfence
    %v24 = vld [vmem:[%s0] sm:$0xff]
    %s25 = sld [smem:[#allocation2]]
    %v26 = vstv %s25
    %v27 = vmul.f32 %v24, %v26
    %s28 = sld [smem:[#allocation2 + $0x1]]
    %v29 = vstv %s28
    %v30 = vmul.f32 %v24, %v29
    %32 = vrot.lane.b32.xlu0 %v30, 127
    %v33 = vpop.permute.xlu0 %32
    %v35 = vadd.f32 %v27, %v33
    %s36 = sld [smem:[#allocation2 + $0x4]]
    %v37 = vstv %s36
    %v38 = vadd.f32 %v35, %v37
    %v39 = vmax.f32 %v38, 0.0
    %s40 = sld [smem:[#allocation2 + $0x2]]
    %v41 = vstv %s40
    %v42 = vmul.f32 %v24, %v41
    %s43 = sld [smem:[#allocation2 + $0x3]]
    %v44 = vstv %s43
    %v45 = vmul.f32 %v24, %v44
    %47 = vrot.lane.b32.xlu0 %v45, 127
    %v48 = vpop.permute.xlu0 %47
    %v50 = vadd.f32 %v42, %v48
    %s51 = sld [smem:[#allocation2 + $0x5]]
    %v52 = vstv %s51
    %v53 = vadd.f32 %v50, %v52
    %v54 = vmax.f32 %v53, 0.0
    %s55 = sld [smem:[#allocation2 + $0x6]]
    %v56 = vstv %s55
    %v57 = vmul.f32 %v39, %v56
    %s58 = sld [smem:[#allocation2 + $0x7]]
    %v59 = vstv %s58
    %v60 = vmul.f32 %v54, %v59
    %v61 = vadd.f32 %v57, %v60
    %s62 = sld [smem:[#allocation2 + $0x8]]
    %v63 = vstv %s62
    %v64 = vadd.f32 %v61, %v63
    %vm65 = vcmask 7168
    %66 = vst.msk [vmem:[%s2] sm:$0xff] %vm65, %v64
    // Predicated region
    $region14: #{tpu_custom_call.1} parent=1 // pred_check
      _
    $region15: #{tpu_custom_call.1} parent=1 // pred_check_branch
      %68 = sbr.rel (0) target = $region17
    $region16: #{tpu_custom_call.1} parent=1 // pred_region
      _
    $region17: #{tpu_custom_call.1} parent=1 // pred_fallthru
      _
    // Predicated region
    $region18: #{tpu_custom_call.1} parent=1 // pred_check
      _
    $region19: #{tpu_custom_call.1} parent=1 // pred_check_branch
      %70 = sbr.rel (0) target = $region21
    $region20: #{tpu_custom_call.1} parent=1 // pred_region
      _
    $region21: #{tpu_custom_call.1} parent=1 // pred_fallthru
      _
    %71 = vsyncpa [#allocation3], 1

</llo_original>
